<compile_context>
chip_gen: v7x
topology: tpu7x:2x2x1
jax: 0.10.0
libtpu: 0.0.40
codegen_flags: <defaults>
</compile_context>

<pallas_src>
import functools

import numpy as np
import jax
import jax.numpy as jnp
from jax.experimental import pallas as pl
from jax.experimental.pallas import tpu as pltpu

_LANES = 128
_SUBLANES = 8
_TILE = _LANES * _SUBLANES              # pad flattened state to a multiple of this
_MAX_BLOCK_ROWS = 4096                  # 4096*128*4B = 2 MiB per buffer
_VMEM_LIMIT_BYTES = 32 * 1024 * 1024    # headroom for 8 double-buffered 2 MiB buffers
_SMALL_STATE_DEFAULT = 64 * 1024        # below this, plain fused JAX beats a kernel launch


def _normalize_kernel(x_ref, low_ref, inv_ref, o_ref):
    """Fused elementwise (x - low) * inv_range on one (block_rows, 128) tile."""
    o_ref[...] = (x_ref[...] - low_ref[...]) * inv_ref[...]


@functools.partial(jax.jit, static_argnames=("block_rows",))
def _normalize_pallas(flat, low2, inv2, *, block_rows):
    """Pad -> reshape -> pallas_call -> slice, all fused under one jit."""
    n = flat.shape[0]
    rows = low2.shape[0]
    padded = rows * _LANES
    x = flat if padded == n else jnp.pad(flat, (0, padded - n))
    x2 = x.reshape(rows, _LANES)

    spec = pl.BlockSpec((block_rows, _LANES), lambda i: (i, 0))
    out2 = pl.pallas_call(
        _normalize_kernel,
        out_shape=jax.ShapeDtypeStruct((rows, _LANES), jnp.float32),
        grid=(pl.cdiv(rows, block_rows),),
        in_specs=[spec, spec, spec],
        out_specs=spec,
        compiler_params=pltpu.CompilerParams(
            dimension_semantics=("parallel",),
            vmem_limit_bytes=_VMEM_LIMIT_BYTES,
        ),
    )(x2, low2, inv2)

    out = out2.reshape(-1)
    return out if padded == n else out[:n]


@jax.jit
def _normalize_small(flat, low, inv_range):
    """Small-state fast path: one fused XLA elementwise op, no kernel launch."""
    return (flat - low) * inv_range


class StateProcessorPallas:
    """JAX/Pallas port of StateProcessor (forward/process/update_bounds)."""

    def __init__(self, env=None, normalize: bool = False, low=None, high=None,
                 small_state_threshold: int = _SMALL_STATE_DEFAULT):
        self.env = env
        self.normalize = normalize
        self.small_state_threshold = int(small_state_threshold)
        if normalize:
            if low is None or high is None:
                raise ValueError("Normalization requires low and high bounds")
            self._set_bounds(low, high)

    # ------------------------------------------------------------------ bounds
    def _set_bounds(self, low, high):
        low = jnp.asarray(low, dtype=jnp.float32).reshape(-1)
        high = jnp.asarray(high, dtype=jnp.float32).reshape(-1)
        if low.shape != high.shape:
            raise ValueError(
                f"low/high shape mismatch: {low.shape} vs {high.shape}")

        rng = high - low
        rng = jnp.where(rng < 1e-6, jnp.float32(1.0), rng)   # range_val[range_val<1e-6]=1.0
        inv_range = jnp.float32(1.0) / rng

        self.low = low
        self.high = high
        self.range_val = rng
        self.inv_range = inv_range
        self._n_bounds = int(low.shape[0])

        # Cached padded / reshaped constants for the Pallas path.
        padded = ((self._n_bounds + _TILE - 1) // _TILE) * _TILE
        pad = padded - self._n_bounds
        low_p = jnp.pad(low, (0, pad)) if pad else low
        inv_p = (jnp.pad(inv_range, (0, pad), constant_values=1.0)
                 if pad else inv_range)
        rows = padded // _LANES
        self._low2 = jax.device_put(low_p.reshape(rows, _LANES))
        self._inv2 = jax.device_put(inv_p.reshape(rows, _LANES))
        self._block_rows = int(min(_MAX_BLOCK_ROWS, rows))   # multiple of 8 by construction

    def update_bounds(self, low, high):
        if not self.normalize:
            return  # mirror PyTorch: warn-and-ignore
        self._set_bounds(low, high)

    # --------------------------------------------------------------- host glue
    def _to_flat_array(self, state):
        if state is None:
            return jnp.zeros((0,), dtype=jnp.float32)
        if isinstance(state, tuple) and len(state) >= 1:   # Gymnasium-style tuple
            state = state[0]
        if isinstance(state, (list, tuple)):
            flat = self._flatten_nested(state)
        elif hasattr(state, "__array__"):
            flat = jnp.asarray(np.asarray(state), dtype=jnp.float32)
        else:
            flat = jnp.asarray(state, dtype=jnp.float32)
        return flat.astype(jnp.float32).reshape(-1)

    @staticmethod
    def _flatten_nested(state):
        flattened = []
        stack = [state]
        while stack:
            current = stack.pop()
            if isinstance(current, (list, tuple)):
                stack.extend(reversed(current))
            else:
                try:
                    flattened.append(float(current))
                except TypeError:
                    flattened.append(0.0)
        return jnp.asarray(flattened, dtype=jnp.float32)

    # ------------------------------------------------------------------ public
    def process(self, state):
        return self.forward(state)

    def forward(self, state):
        flat = self._to_flat_array(state)
        if flat.shape[0] == 0:
            return flat
        if not self.normalize:
            # identity path: no kernel, no extra HBM round trip
            return flat

        if flat.shape[0] != self._n_bounds:
            raise ValueError(
                f"state length {flat.shape[0]} does not match bounds length "
                f"{self._n_bounds}")

        if flat.shape[0] <= self.small_state_threshold:
            return _normalize_small(flat, self.low, self.inv_range)
        return _normalize_pallas(flat, self._low2, self._inv2,
                                 block_rows=self._block_rows)


if __name__ == "__main__":
    key = jax.random.PRNGKey(0)
    k1, k2 = jax.random.split(key)

    # Small deterministic example: a (2, 4, 16, 16) observation -> 2048 floats.
    state = jax.random.normal(k1, (2, 4, 16, 16), dtype=jnp.float32) * 3.0
    n = 2 * 4 * 16 * 16

    low = -2.0 * jnp.ones((n,), dtype=jnp.float32)
    high = jax.random.uniform(k2, (n,), dtype=jnp.float32, minval=-2.0, maxval=4.0)
    # degenerate ranges to exercise the range < 1e-6 -> 1.0 branch
    high = high.at[:8].set(low[:8])

    # Pure-JAX reference (mirrors PyTorch: (x - low) / range_val)
    flat = state.astype(jnp.float32).reshape(-1)
    rng = high - low
    rng = jnp.where(rng < 1e-6, 1.0, rng)
    ref = (flat - low) / rng

    # 1) Force the Pallas path (threshold=0) so the kernel itself is exercised.
    sp_pallas = StateProcessorPallas(env=None, normalize=True, low=low, high=high,
                                     small_state_threshold=0)
    out_pallas = jax.block_until_ready(sp_pallas.process(state))
    assert out_pallas.shape == (n,) and out_pallas.dtype == jnp.float32
    np.testing.assert_allclose(np.asarray(out_pallas), np.asarray(ref),
                               rtol=1e-5, atol=1e-6)

    # 2) Default dispatch: small RL-sized state takes the fused-JAX fast path.
    sp_small = StateProcessorPallas(env=None, normalize=True, low=low, high=high)
    out_small = jax.block_until_ready(sp_small.process(state))
    np.testing.assert_allclose(np.asarray(out_small), np.asarray(ref),
                               rtol=1e-5, atol=1e-6)

    # 3) Non-normalized path (gym-style tuple input): pure flatten/cast, no kernel.
    sp_id = StateProcessorPallas(env=None, normalize=False)
    out_id = jax.block_until_ready(sp_id.process((state,)))
    np.testing.assert_allclose(np.asarray(out_id), np.asarray(flat), rtol=0, atol=0)

    # 4) update_bounds rebuilds the cached constants correctly.
    sp_pallas.update_bounds(low * 0.5, high)
    rng2 = jnp.where(high - low * 0.5 < 1e-6, 1.0, high - low * 0.5)
    ref2 = (flat - low * 0.5) / rng2
    out2 = jax.block_until_ready(sp_pallas.process(state))
    np.testing.assert_allclose(np.asarray(out2), np.asarray(ref2),
                               rtol=1e-5, atol=1e-6)

    print("KERNEL_OK")
</pallas_src>

<mosaic_0001>
module attributes {stable_mosaic.version = 11 : i64} {
  func.func @_normalize_kernel(%arg0: i32, %arg1: memref<16x128xf32, #tpu.memory_space<vmem>>, %arg2: memref<16x128xf32, #tpu.memory_space<vmem>>, %arg3: memref<16x128xf32, #tpu.memory_space<vmem>>, %arg4: memref<16x128xf32, #tpu.memory_space<vmem>>) attributes {dimension_semantics = [#tpu.dimension_semantics<parallel>], iteration_bounds = array<i64: 1>, scalar_prefetch = 0 : i64, scratch_operands = 0 : i64, tpu.core_type = #tpu.core_type<tc>, window_params = [{transform_indices = @transform_0, window_bounds = array<i64: 16, 128>}, {transform_indices = @transform_1, window_bounds = array<i64: 16, 128>}, {transform_indices = @transform_2, window_bounds = array<i64: 16, 128>}, {transform_indices = @transform_3, window_bounds = array<i64: 16, 128>}]} {
    %c0 = arith.constant 0 : index
    %c0_0 = arith.constant 0 : index
    %0 = vector.load %arg1[%c0, %c0_0] : memref<16x128xf32, #tpu.memory_space<vmem>>, vector<16x128xf32>
    %c0_1 = arith.constant 0 : index
    %c0_2 = arith.constant 0 : index
    %1 = vector.load %arg2[%c0_1, %c0_2] : memref<16x128xf32, #tpu.memory_space<vmem>>, vector<16x128xf32>
    %2 = arith.subf %0, %1 : vector<16x128xf32>
    %c0_3 = arith.constant 0 : index
    %c0_4 = arith.constant 0 : index
    %3 = vector.load %arg3[%c0_3, %c0_4] : memref<16x128xf32, #tpu.memory_space<vmem>>, vector<16x128xf32>
    %4 = arith.mulf %2, %3 : vector<16x128xf32>
    %c0_5 = arith.constant 0 : index
    %c0_6 = arith.constant 0 : index
    %5 = vector.load %arg4[%c0_5, %c0_6] : memref<16x128xf32, #tpu.memory_space<vmem>>, vector<16x128xf32>
    tpu.vector_store %arg4[%c0_5, %c0_6], %4 {strides = array<i32>} : memref<16x128xf32, #tpu.memory_space<vmem>>, vector<16x128xf32>,
    return
  }
  func.func @transform_0(%arg0: i32) -> (i32, i32) {
    %c0_i32 = arith.constant 0 : i32
    %c0_i32_0 = arith.constant 0 : i32
    return %arg0, %c0_i32 : i32, i32
  }
  func.func @transform_1(%arg0: i32) -> (i32, i32) {
    %c0_i32 = arith.constant 0 : i32
    %c0_i32_0 = arith.constant 0 : i32
    return %arg0, %c0_i32 : i32, i32
  }
  func.func @transform_2(%arg0: i32) -> (i32, i32) {
    %c0_i32 = arith.constant 0 : i32
    %c0_i32_0 = arith.constant 0 : i32
    return %arg0, %c0_i32 : i32, i32
  }
  func.func @transform_3(%arg0: i32) -> (i32, i32) {
    %c0_i32 = arith.constant 0 : i32
    %c0_i32_0 = arith.constant 0 : i32
    return %arg0, %c0_i32 : i32, i32
  }
}

</mosaic_0001>

<llo_original>
// kernel: _normalize_pallas.1
$region0: #{_normalize_pallas.1}
  #allocation0 [shape = 'u32[]', space=smem, size = 0x4, offset = 0x4, fixed_abs, tag = 'smem constant byte address 0x4 - core index']
  #allocation1 [shape = 'u32[144,128]{1,0:T(1,128)}', space=vmem, size = 0x12000, scoped, tag = 'internal scratch']
  %s0 = inlined_call_operand.hbm [shape: f32[16,128], index: 0, kind: input, shape index: {}]
  %s1 = inlined_call_operand.hbm [shape: f32[16,128], index: 1, kind: input, shape index: {}]
  %s2 = inlined_call_operand.hbm [shape: f32[16,128], index: 2, kind: input, shape index: {}]
  %s3 = inlined_call_operand.hbm [shape: f32[16,128], index: 3, kind: output, shape index: {}]
  %s4 = sld [smem:[#allocation0]]
  $region34: #{_normalize_pallas.1} parent=0
    _
  %s6 = ssub.s32 1, %s4
  %s7 = scalar_select 0, %s6, %s4
  $region1: #{_normalize_pallas.1} parent=0
    #allocation2 [shape = 'u8[8192]{0}', space=vmem, size = 0x2000, scoped, tag = 'input window, operand 0, single buffered']
    #allocation3 [shape = 's32[1]{0}', space=sflag, size = 0x4, scoped, tag = 'scoped memory for _normalize_pallas.1']
    #allocation4 [shape = 's32[1]{0}', space=sflag, size = 0x4, scoped, tag = 'scoped memory for _normalize_pallas.1']
    #allocation5 [shape = 'u8[8192]{0}', space=vmem, size = 0x2000, scoped, tag = 'input window, operand 1, single buffered']
    #allocation6 [shape = 's32[1]{0}', space=sflag, size = 0x4, scoped, tag = 'scoped memory for _normalize_pallas.1']
    #allocation7 [shape = 'u8[8192]{0}', space=vmem, size = 0x2000, scoped, tag = 'input window, operand 2, single buffered']
    #allocation8 [shape = 'u8[8192]{0}', space=vmem, size = 0x2000, scoped, tag = 'output window, operand 0, single buffered']
    %8 = vsyncpa [#allocation3], 0
    %9 = vsyncpa [#allocation6], 0
    %10 = vsyncpa [#allocation4], 0
    // Predicated region
    $region2: #{_normalize_pallas.1} parent=1 // pred_check
      _
    $region3: #{_normalize_pallas.1} parent=1 // pred_check_branch
      %12 = sbr.rel (0) target = $region5
    $region4: #{_normalize_pallas.1} parent=1 // pred_region
      %s14 = ssub.s32 256, 256
      %15 = vsyncadd [#allocation3], %s14
      %s16 = sshll.u32 [#allocation2], 4
      %s17 = int_to_ptr.vmem [resolvable:$true] %s16
      %22 = dma.hbm_to_vmem [thread:$0]  %s0, 256, %s17, [#allocation3], 128, 128, 8
    $region5: #{_normalize_pallas.1} parent=1 // pred_fallthru
      _
    // Predicated region
    $region6: #{_normalize_pallas.1} parent=1 // pred_check
      _
    $region7: #{_normalize_pallas.1} parent=1 // pred_check_branch
      %24 = sbr.rel (0) target = $region9
    $region8: #{_normalize_pallas.1} parent=1 // pred_region
      %s26 = ssub.s32 256, 256
      %27 = vsyncadd [#allocation6], %s26
      %s28 = sshll.u32 [#allocation5], 4
      %s29 = int_to_ptr.vmem [resolvable:$true] %s28
      %34 = dma.hbm_to_vmem [thread:$0]  %s1, 256, %s29, [#allocation6], 128, 128, 8
    $region9: #{_normalize_pallas.1} parent=1 // pred_fallthru
      _
    // Predicated region
    $region10: #{_normalize_pallas.1} parent=1 // pred_check
      _
    $region11: #{_normalize_pallas.1} parent=1 // pred_check_branch
      %36 = sbr.rel (0) target = $region13
    $region12: #{_normalize_pallas.1} parent=1 // pred_region
      %s38 = ssub.s32 256, 256
      %39 = vsyncadd [#allocation6], %s38
      %s40 = sshll.u32 [#allocation7], 4
      %s41 = int_to_ptr.vmem [resolvable:$true] %s40
      %46 = dma.hbm_to_vmem [thread:$0]  %s2, 256, %s41, [#allocation6], 128, 128, 8
    $region13: #{_normalize_pallas.1} parent=1 // pred_fallthru
      _
    // Predicated region
    $region14: #{_normalize_pallas.1} parent=1 // pred_check
      _
    $region15: #{_normalize_pallas.1} parent=1 // pred_check_branch
      %48 = sbr.rel (0) target = $region17
    $region16: #{_normalize_pallas.1} parent=1 // pred_region
      %49 = dma.done [#allocation3], 256
    $region17: #{_normalize_pallas.1} parent=1 // pred_fallthru
      _
    // Predicated region
    $region18: #{_normalize_pallas.1} parent=1 // pred_check
      _
    $region19: #{_normalize_pallas.1} parent=1 // pred_check_branch
      %51 = sbr.rel (0) target = $region21
    $region20: #{_normalize_pallas.1} parent=1 // pred_region
      %52 = dma.done [#allocation6], 256
    $region21: #{_normalize_pallas.1} parent=1 // pred_fallthru
      _
    // Predicated region
    $region22: #{_normalize_pallas.1} parent=1 // pred_check
      _
    $region23: #{_normalize_pallas.1} parent=1 // pred_check_branch
      %54 = sbr.rel (0) target = $region25
    $region24: #{_normalize_pallas.1} parent=1 // pred_region
      %55 = dma.done [#allocation6], 256
    $region25: #{_normalize_pallas.1} parent=1 // pred_fallthru
      _
    %v56 = vld [vmem:[#allocation2] sm:$0xff]
    %v57 = vld [vmem:[#allocation2 + $0x8] sm:$0xff]
    %v58 = vld [vmem:[#allocation5] sm:$0xff]
    %v59 = vld [vmem:[#allocation5 + $0x8] sm:$0xff]
    %v60 = vsub.f32 %v56, %v58
    %v61 = vsub.f32 %v57, %v59
    %v62 = vld [vmem:[#allocation7] sm:$0xff]
    %v63 = vld [vmem:[#allocation7 + $0x8] sm:$0xff]
    %v64 = vmul.f32 %v60, %v62
    %v65 = vmul.f32 %v61, %v63
    %66 = vst [vmem:[#allocation8] sm:$0xff] %v64
    %67 = vst [vmem:[#allocation8 + $0x8] sm:$0xff] %v65
    // Predicated region
    $region26: #{_normalize_pallas.1} parent=1 // pred_check
      _
    $region27: #{_normalize_pallas.1} parent=1 // pred_check_branch
      %69 = sbr.rel (0) target = $region29
    $region28: #{_normalize_pallas.1} parent=1 // pred_region
      %s71 = ssub.s32 256, 256
      %72 = vsyncadd [#allocation4], %s71
      %s73 = sshll.u32 [#allocation8], 4
      %s74 = int_to_ptr.vmem [resolvable:$true] %s73
      %79 = dma.vmem_to_hbm [thread:$0]  %s74, 256, %s3, [#allocation4], 128, 128, 8
    $region29: #{_normalize_pallas.1} parent=1 // pred_fallthru
      _
    // Predicated region
    $region30: #{_normalize_pallas.1} parent=1 // pred_check
      _
    $region31: #{_normalize_pallas.1} parent=1 // pred_check_branch
      %81 = sbr.rel (0) target = $region33
    $region32: #{_normalize_pallas.1} parent=1 // pred_region
      %82 = dma.done [#allocation4], 256
    $region33: #{_normalize_pallas.1} parent=1 // pred_fallthru
      _
    %83 = vsyncpa [#allocation3], 1
    %84 = vsyncpa [#allocation6], 1
    %85 = vsyncpa [#allocation4], 1

</llo_original>
